<compile_context>
chip_gen: v6e
topology: v6e:2x2x1
jax: 0.10.0
libtpu: 0.0.40
codegen_flags: <defaults>
</compile_context>

<pallas_src>
import math
from functools import partial

import jax
import jax.numpy as jnp
from jax.experimental import pallas as pl
from jax.experimental.pallas import tpu as pltpu


def _self_attention_kernel(x_ref, w_ref, b_ref, o_ref, *,
                           num_heads, head_dim, hidden, scale, approx_recip):
    # One batch element per grid step.
    S = x_ref.shape[1]
    H = hidden
    mxu_dt = x_ref.dtype           # dtype fed to the MXU (f32 or bf16)

    x = x_ref[0]                   # (S, H)
    w = w_ref[...]                 # (H, 3H)   resident across the grid
    b = b_ref[...]                 # (1, 3H)   f32

    # Fused Q/K/V projection: one MXU matmul, f32 accumulation, f32 bias add.
    qkv = jnp.dot(x, w, preferred_element_type=jnp.float32) + b   # (S, 3H) f32

    # Split heads via static lane slices + stack -> (num_heads, S, head_dim).
    def gather_heads(base):
        return jnp.stack(
            [qkv[:, base + h * head_dim: base + (h + 1) * head_dim]
             for h in range(num_heads)],
            axis=0)

    q = gather_heads(0)
    k = gather_heads(H)
    v = gather_heads(2 * H)

    # Batched per-head attention (heads folded into one einsum each).
    scores = jnp.einsum("hqd,hkd->hqk",
                        q.astype(mxu_dt), k.astype(mxu_dt),
                        preferred_element_type=jnp.float32) * scale   # (nh, S, S)
    # additive attention mask is all zeros (zero_tensor in torch) -> no-op

    m = jnp.max(scores, axis=-1, keepdims=True)
    e = jnp.exp(scores - m)
    denom = jnp.sum(e, axis=-1, keepdims=True)
    probs = e * pl.reciprocal(denom, approx=approx_recip)             # f32 softmax

    ctx = jnp.einsum("hqk,hkd->hqd",
                     probs.astype(mxu_dt), v.astype(mxu_dt),
                     preferred_element_type=jnp.float32)              # (nh, S, dh)

    # Merge heads along the lane dim -> (S, H) and store lane-dense.
    merged = jnp.concatenate([ctx[h] for h in range(num_heads)], axis=-1)
    o_ref[0] = jnp.tanh(merged).astype(o_ref.dtype)


def self_attention_forward(x, wq, wk, wv, bq, bk, bv, num_heads, *,
                           mxu_dtype=None, approx_recip=True):
    """x: (B, S, H) float32.  wq/wk/wv: (H, H) applied as x @ W + b.  b*: (H,).

    mxu_dtype: dtype fed to the MXU matmuls (e.g. jnp.bfloat16 on v6e/v7x);
               accumulation, softmax and tanh stay in float32.
    """
    B, S, H = x.shape
    head_dim = H // num_heads
    if mxu_dtype is None:
        mxu_dtype = x.dtype

    # Glue (plain JAX): fuse projections into one (H, 3H) weight / (1, 3H) bias.
    w_qkv = jnp.concatenate([wq, wk, wv], axis=1).astype(mxu_dtype)       # (H, 3H)
    b_qkv = jnp.concatenate([bq, bk, bv], axis=0).reshape(1, 3 * H)       # (1, 3H) f32
    b_qkv = b_qkv.astype(jnp.float32)
    x_in = x.astype(mxu_dtype)

    kernel = partial(_self_attention_kernel,
                     num_heads=num_heads, head_dim=head_dim, hidden=H,
                     scale=1.0 / math.sqrt(head_dim), approx_recip=approx_recip)

    return pl.pallas_call(
        kernel,
        out_shape=jax.ShapeDtypeStruct((B, S, H), x.dtype),
        grid=(B,),
        in_specs=[
            pl.BlockSpec((1, S, H), lambda b: (b, 0, 0)),     # per-batch x tile
            pl.BlockSpec((H, 3 * H), lambda b: (0, 0)),       # weights: resident
            pl.BlockSpec((1, 3 * H), lambda b: (0, 0)),       # biases:  resident
        ],
        out_specs=pl.BlockSpec((1, S, H), lambda b: (b, 0, 0)),
        compiler_params=pltpu.CompilerParams(
            dimension_semantics=("parallel",)),               # v7x: 2 TCs split B
    )(x_in, w_qkv, b_qkv)


def self_attention_reference(x, wq, wk, wv, bq, bk, bv, num_heads):
    """Pure-JAX reference of BertSelfAttention(zero mask, eval) + tanh."""
    B, S, H = x.shape
    dh = H // num_heads

    def heads(t):  # (B, S, H) -> (B, nh, S, dh)
        return jnp.transpose(t.reshape(B, S, num_heads, dh), (0, 2, 1, 3))

    q = heads(x @ wq + bq)
    k = heads(x @ wk + bk)
    v = heads(x @ wv + bv)
    scores = jnp.einsum("bnqd,bnkd->bnqk", q, k) / math.sqrt(dh)
    probs = jax.nn.softmax(scores, axis=-1)
    ctx = jnp.einsum("bnqk,bnkd->bnqd", probs, v)
    ctx = jnp.transpose(ctx, (0, 2, 1, 3)).reshape(B, S, H)
    return jnp.tanh(ctx)


if __name__ == "__main__":
    B, S, H, NUM_HEADS = 2, 8, 32, 4   # max_seq_len = S = 8

    key = jax.random.PRNGKey(0)
    kx, kq, kk, kv, kbq, kbk, kbv = jax.random.split(key, 7)
    x = jax.random.normal(kx, (B, S, H), dtype=jnp.float32)
    scale = 0.02
    wq = scale * jax.random.normal(kq, (H, H), dtype=jnp.float32)
    wk = scale * jax.random.normal(kk, (H, H), dtype=jnp.float32)
    wv = scale * jax.random.normal(kv, (H, H), dtype=jnp.float32)
    bq = scale * jax.random.normal(kbq, (H,), dtype=jnp.float32)
    bk = scale * jax.random.normal(kbk, (H,), dtype=jnp.float32)
    bv = scale * jax.random.normal(kbv, (H,), dtype=jnp.float32)

    ref = self_attention_reference(x, wq, wk, wv, bq, bk, bv, NUM_HEADS)

    # 1) Strict-precision path: f32 MXU inputs, exact reciprocal (matches the
    #    torch module's f32 math to tight tolerance).
    out = self_attention_forward(x, wq, wk, wv, bq, bk, bv, NUM_HEADS,
                                 mxu_dtype=jnp.float32, approx_recip=False)
    out = jax.block_until_ready(out)
    assert out.shape == (B, S, H)
    assert jnp.allclose(out, ref, atol=1e-5, rtol=1e-5), "f32 path mismatch vs reference"

    # 2) Throughput path (v6e/v7x recommendation): bf16 MXU inputs, f32
    #    accumulation/softmax/tanh, EUP approx reciprocal.
    out_fast = self_attention_forward(x, wq, wk, wv, bq, bk, bv, NUM_HEADS,
                                      mxu_dtype=jnp.bfloat16, approx_recip=True)
    out_fast = jax.block_until_ready(out_fast)
    assert out_fast.shape == (B, S, H)
    assert jnp.allclose(out_fast, ref, atol=2e-2, rtol=2e-2), "bf16 path mismatch vs reference"

    print("KERNEL_OK")
</pallas_src>

<mosaic_0001>
module attributes {stable_mosaic.version = 11 : i64} {
  func.func @_self_attention_kernel(%arg0: i32, %arg1: memref<1x8x32xf32, #tpu.memory_space<vmem>>, %arg2: memref<32x96xf32, #tpu.memory_space<vmem>>, %arg3: memref<1x96xf32, #tpu.memory_space<vmem>>, %arg4: memref<1x8x32xf32, #tpu.memory_space<vmem>>) attributes {dimension_semantics = [#tpu.dimension_semantics<parallel>], iteration_bounds = array<i64: 2>, scalar_prefetch = 0 : i64, scratch_operands = 0 : i64, tpu.core_type = #tpu.core_type<tc>, window_params = [{transform_indices = @transform_0, window_bounds = array<i64: 1, 8, 32>}, {pipeline_mode = #tpu.pipeline_mode<synchronous>, transform_indices = @transform_1, window_bounds = array<i64: 32, 96>}, {pipeline_mode = #tpu.pipeline_mode<synchronous>, transform_indices = @transform_2, window_bounds = array<i64: 1, 96>}, {transform_indices = @transform_3, window_bounds = array<i64: 1, 8, 32>}]} {
    %c0 = arith.constant 0 : index
    %c0_0 = arith.constant 0 : index
    %c0_1 = arith.constant 0 : index
    %0 = vector.load %arg1[%c0, %c0_0, %c0_1] : memref<1x8x32xf32, #tpu.memory_space<vmem>>, vector<1x8x32xf32>
    %1 = vector.shape_cast %0 : vector<1x8x32xf32> to vector<8x32xf32>
    %c0_2 = arith.constant 0 : index
    %c0_3 = arith.constant 0 : index
    %2 = vector.load %arg2[%c0_2, %c0_3] : memref<32x96xf32, #tpu.memory_space<vmem>>, vector<32x96xf32>
    %c0_4 = arith.constant 0 : index
    %c0_5 = arith.constant 0 : index
    %3 = vector.load %arg3[%c0_4, %c0_5] : memref<1x96xf32, #tpu.memory_space<vmem>>, vector<1x96xf32>
    %cst = arith.constant dense<0.000000e+00> : vector<8x96xf32>
    %4 = tpu.matmul %1, %2, %cst {dimension_numbers = #tpu.dot_dimension_numbers<[1], [0], [0], [1], [0, 0, 1, 1], [], []>} : vector<8x32xf32>, vector<32x96xf32>, vector<8x96xf32> -> vector<8x96xf32>
    %5 = vector.broadcast %3 : vector<1x96xf32> to vector<8x96xf32>
    %6 = arith.addf %4, %5 : vector<8x96xf32>
    %7 = vector.extract_strided_slice %6 {offsets = [0, 0], sizes = [8, 8], strides = [1, 1]} : vector<8x96xf32> to vector<8x8xf32>
    %8 = vector.extract_strided_slice %6 {offsets = [0, 8], sizes = [8, 8], strides = [1, 1]} : vector<8x96xf32> to vector<8x8xf32>
    %9 = vector.extract_strided_slice %6 {offsets = [0, 16], sizes = [8, 8], strides = [1, 1]} : vector<8x96xf32> to vector<8x8xf32>
    %10 = vector.extract_strided_slice %6 {offsets = [0, 24], sizes = [8, 8], strides = [1, 1]} : vector<8x96xf32> to vector<8x8xf32>
    %11 = vector.shape_cast %7 : vector<8x8xf32> to vector<1x8x8xf32>
    %12 = vector.shape_cast %8 : vector<8x8xf32> to vector<1x8x8xf32>
    %13 = vector.shape_cast %9 : vector<8x8xf32> to vector<1x8x8xf32>
    %14 = vector.shape_cast %10 : vector<8x8xf32> to vector<1x8x8xf32>
    %15 = tpu.concatenate %11, %12, %13, %14 in 0 : vector<1x8x8xf32>, vector<1x8x8xf32>, vector<1x8x8xf32>, vector<1x8x8xf32> -> vector<4x8x8xf32>
    %16 = vector.extract_strided_slice %6 {offsets = [0, 32], sizes = [8, 8], strides = [1, 1]} : vector<8x96xf32> to vector<8x8xf32>
    %17 = vector.extract_strided_slice %6 {offsets = [0, 40], sizes = [8, 8], strides = [1, 1]} : vector<8x96xf32> to vector<8x8xf32>
    %18 = vector.extract_strided_slice %6 {offsets = [0, 48], sizes = [8, 8], strides = [1, 1]} : vector<8x96xf32> to vector<8x8xf32>
    %19 = vector.extract_strided_slice %6 {offsets = [0, 56], sizes = [8, 8], strides = [1, 1]} : vector<8x96xf32> to vector<8x8xf32>
    %20 = vector.shape_cast %16 : vector<8x8xf32> to vector<1x8x8xf32>
    %21 = vector.shape_cast %17 : vector<8x8xf32> to vector<1x8x8xf32>
    %22 = vector.shape_cast %18 : vector<8x8xf32> to vector<1x8x8xf32>
    %23 = vector.shape_cast %19 : vector<8x8xf32> to vector<1x8x8xf32>
    %24 = tpu.concatenate %20, %21, %22, %23 in 0 : vector<1x8x8xf32>, vector<1x8x8xf32>, vector<1x8x8xf32>, vector<1x8x8xf32> -> vector<4x8x8xf32>
    %25 = vector.extract_strided_slice %6 {offsets = [0, 64], sizes = [8, 8], strides = [1, 1]} : vector<8x96xf32> to vector<8x8xf32>
    %26 = vector.extract_strided_slice %6 {offsets = [0, 72], sizes = [8, 8], strides = [1, 1]} : vector<8x96xf32> to vector<8x8xf32>
    %27 = vector.extract_strided_slice %6 {offsets = [0, 80], sizes = [8, 8], strides = [1, 1]} : vector<8x96xf32> to vector<8x8xf32>
    %28 = vector.extract_strided_slice %6 {offsets = [0, 88], sizes = [8, 8], strides = [1, 1]} : vector<8x96xf32> to vector<8x8xf32>
    %29 = vector.shape_cast %25 : vector<8x8xf32> to vector<1x8x8xf32>
    %30 = vector.shape_cast %26 : vector<8x8xf32> to vector<1x8x8xf32>
    %31 = vector.shape_cast %27 : vector<8x8xf32> to vector<1x8x8xf32>
    %32 = vector.shape_cast %28 : vector<8x8xf32> to vector<1x8x8xf32>
    %33 = tpu.concatenate %29, %30, %31, %32 in 0 : vector<1x8x8xf32>, vector<1x8x8xf32>, vector<1x8x8xf32>, vector<1x8x8xf32> -> vector<4x8x8xf32>
    "tpu.trace_start"() <{level = 10 : i32, message = "hqd,hkd->hqk"}> : () -> ()
    %cst_6 = arith.constant dense<0.000000e+00> : vector<4x8x8xf32>
    %34 = tpu.matmul %15, %24, %cst_6 {dimension_numbers = #tpu.dot_dimension_numbers<[2], [2], [1], [1], [0, 0, 0, 1, 1, 1], [0], [0]>} : vector<4x8x8xf32>, vector<4x8x8xf32>, vector<4x8x8xf32> -> vector<4x8x8xf32>
    "tpu.trace_stop"() : () -> ()
    %cst_7 = arith.constant 0.353553385 : f32
    %35 = vector.broadcast %cst_7 : f32 to vector<4x8x8xf32>
    %36 = arith.mulf %34, %35 : vector<4x8x8xf32>
    %cst_8 = arith.constant dense<0xFF800000> : vector<4x8xf32>
    %37 = vector.multi_reduction <maximumf>, %36, %cst_8 [2] : vector<4x8x8xf32> to vector<4x8xf32>
    %38 = vector.shape_cast %37 : vector<4x8xf32> to vector<4x8x1xf32>
    %39 = vector.broadcast %38 : vector<4x8x1xf32> to vector<4x8x8xf32>
    %40 = arith.subf %36, %39 : vector<4x8x8xf32>
    %41 = math.exp %40 : vector<4x8x8xf32>
    %cst_9 = arith.constant dense<0.000000e+00> : vector<4x8xf32>
    %42 = vector.multi_reduction <add>, %41, %cst_9 [2] : vector<4x8x8xf32> to vector<4x8xf32>
    %43 = vector.shape_cast %42 : vector<4x8xf32> to vector<4x8x1xf32>
    %44 = tpu.reciprocal %43 : vector<4x8x1xf32> -> vector<4x8x1xf32>
    %45 = vector.broadcast %44 : vector<4x8x1xf32> to vector<4x8x8xf32>
    %46 = arith.mulf %41, %45 : vector<4x8x8xf32>
    "tpu.trace_start"() <{level = 10 : i32, message = "hqk,hkd->hqd"}> : () -> ()
    %cst_10 = arith.constant dense<0.000000e+00> : vector<4x8x8xf32>
    %47 = tpu.matmul %46, %33, %cst_10 {dimension_numbers = #tpu.dot_dimension_numbers<[2], [1], [1], [2], [0, 0, 0, 1, 1, 2], [0], [0]>} : vector<4x8x8xf32>, vector<4x8x8xf32>, vector<4x8x8xf32> -> vector<4x8x8xf32>
    "tpu.trace_stop"() : () -> ()
    %48 = vector.extract_strided_slice %47 {offsets = [0, 0, 0], sizes = [1, 8, 8], strides = [1, 1, 1]} : vector<4x8x8xf32> to vector<1x8x8xf32>
    %49 = vector.shape_cast %48 : vector<1x8x8xf32> to vector<8x8xf32>
    %50 = vector.extract_strided_slice %47 {offsets = [1, 0, 0], sizes = [1, 8, 8], strides = [1, 1, 1]} : vector<4x8x8xf32> to vector<1x8x8xf32>
    %51 = vector.shape_cast %50 : vector<1x8x8xf32> to vector<8x8xf32>
    %52 = vector.extract_strided_slice %47 {offsets = [2, 0, 0], sizes = [1, 8, 8], strides = [1, 1, 1]} : vector<4x8x8xf32> to vector<1x8x8xf32>
    %53 = vector.shape_cast %52 : vector<1x8x8xf32> to vector<8x8xf32>
    %54 = vector.extract_strided_slice %47 {offsets = [3, 0, 0], sizes = [1, 8, 8], strides = [1, 1, 1]} : vector<4x8x8xf32> to vector<1x8x8xf32>
    %55 = vector.shape_cast %54 : vector<1x8x8xf32> to vector<8x8xf32>
    %56 = tpu.concatenate %49, %51, %53, %55 in 1 : vector<8x8xf32>, vector<8x8xf32>, vector<8x8xf32>, vector<8x8xf32> -> vector<8x32xf32>
    %57 = math.tanh %56 : vector<8x32xf32>
    %c0_11 = arith.constant 0 : index
    %c0_12 = arith.constant 0 : index
    %c0_13 = arith.constant 0 : index
    %58 = vector.load %arg4[%c0_11, %c0_12, %c0_13] : memref<1x8x32xf32, #tpu.memory_space<vmem>>, vector<1x8x32xf32>
    %59 = vector.shape_cast %58 : vector<1x8x32xf32> to vector<8x32xf32>
    %60 = vector.shape_cast %57 : vector<8x32xf32> to vector<1x8x32xf32>
    tpu.vector_store %arg4[%c0_11, %c0_12, %c0_13], %60 {strides = array<i32>} : memref<1x8x32xf32, #tpu.memory_space<vmem>>, vector<1x8x32xf32>,
    return
  }
  func.func @transform_0(%arg0: i32) -> (i32, i32, i32) {
    %c0_i32 = arith.constant 0 : i32
    %c0_i32_0 = arith.constant 0 : i32
    %c0_i32_1 = arith.constant 0 : i32
    return %arg0, %c0_i32, %c0_i32_0 : i32, i32, i32
  }
  func.func @transform_1(%arg0: i32) -> (i32, i32) {
    %c0_i32 = arith.constant 0 : i32
    %c0_i32_0 = arith.constant 0 : i32
    %c0_i32_1 = arith.constant 0 : i32
    return %c0_i32, %c0_i32_0 : i32, i32
  }
  func.func @transform_2(%arg0: i32) -> (i32, i32) {
    %c0_i32 = arith.constant 0 : i32
    %c0_i32_0 = arith.constant 0 : i32
    %c0_i32_1 = arith.constant 0 : i32
    return %c0_i32, %c0_i32_0 : i32, i32
  }
  func.func @transform_3(%arg0: i32) -> (i32, i32, i32) {
    %c0_i32 = arith.constant 0 : i32
    %c0_i32_0 = arith.constant 0 : i32
    %c0_i32_1 = arith.constant 0 : i32
    return %arg0, %c0_i32, %c0_i32_0 : i32, i32, i32
  }
}

</mosaic_0001>

<llo_original>
// kernel: tpu_custom_call.1
$region0: #{tpu_custom_call.1}
  #allocation0 [shape = 'u32[]', space=smem, size = 0x4, offset = 0x4, fixed_abs, tag = 'smem constant byte address 0x4 - core index']
  #allocation1 [shape = 'u32[144,128]{1,0:T(1,128)}', space=vmem, size = 0x12000, scoped, tag = 'internal scratch']
  %s0 = inlined_call_operand.hbm [shape: f32[2,8,32], index: 0, kind: input, shape index: {}]
  %s1 = inlined_call_operand.hbm [shape: f32[32,96], index: 1, kind: input, shape index: {}]
  %s2 = inlined_call_operand.vmem [shape: f32[1,96], index: 2, kind: input, shape index: {}]
  %s3 = inlined_call_operand.hbm [shape: f32[2,8,32], index: 3, kind: output, shape index: {}]
  %s4 = sld [smem:[#allocation0]]
  $region53: #{tpu_custom_call.1} parent=0
    _
  %s6 = ssub.s32 1, %s4
  %s7 = scalar_select 0, %s6, %s4
  $region1: #{tpu_custom_call.1} parent=0
    #allocation2 [shape = 'u8[8192]{0}', space=vmem, size = 0x2000, scoped, tag = 'input window, operand 0']
    #allocation3 [shape = 's32[2]{0}', space=sflag, size = 0x8, scoped, tag = 'scoped memory for tpu_custom_call.1']
    #allocation4 [shape = 's32[2]{0}', space=sflag, size = 0x8, scoped, tag = 'scoped memory for tpu_custom_call.1']
    #allocation5 [shape = 'u8[16384]{0}', space=vmem, size = 0x4000, scoped, tag = 'input window, operand 1, single buffered']
    #allocation6 [shape = 's32[1]{0}', space=sflag, size = 0x4, scoped, tag = 'scoped memory for tpu_custom_call.1']
    #allocation7 [shape = 'u8[8192]{0}', space=vmem, size = 0x2000, scoped, tag = 'output window, operand 0']
    %8 = vsyncpa [#allocation3], 0
    %s9 = scalar_lea.sflag [#allocation3], 1
    %10 = vsyncpa %s9, 0
    %11 = vsyncpa [#allocation6], 0
    %12 = vsyncpa [#allocation4], 0
    %s13 = scalar_lea.sflag [#allocation4], 1
    %14 = vsyncpa %s13, 0
    loop: start=0, step=1, limit=4
    $region2: #{tpu_custom_call.1} parent=1 // loop_pre_header
      _
    $region3: #{tpu_custom_call.1} parent=1 // loop_header
      %s16 = sphi 0, %s20
      %p17 = scmp.ge.s32.totalorder %s16, 4
      %s26 = sphi 0, %s28
      %s29 = sphi 0, %s26
      %s30 = sphi 0, %s29
      %s46 = sphi 0, %s30
      %s50 = sphi 0, %s50
      %s52 = sphi 0, %s50
      %s53 = sphi 0, %s52
      %s67 = sphi 0, %s53
      %s71 = sphi 0, %s71
      %s73 = sphi 0, %s71
      %s74 = sphi 0, %s73
      %s88 = sphi 0, %s74
      %s94 = sphi 0, %s96
      %s97 = sphi 0, %s94
      %s98 = sphi 0, %s97
      %s114 = sphi 0, %s98
    $region4: #{tpu_custom_call.1} parent=1 // loop_header_branch
      %19 = sbr.rel (%p17) target = $region8
    $region5: #{tpu_custom_call.1} parent=1 // loop_body
      %s21 = ssub.s32 %s16, 1
      %s22 = ssub.s32 %s16, 2
      %s23 = sadd.s32 %s16, 1
      %s24 = ssub.s32 %s16, %s23
      %p25 = scmp.eq.s32.totalorder %s24, 0
      %s27 = sadd.s32 %s26, 1
      %s28 = scalar_select %p25, %s26, %s27
      %p31 = pneg %p25
      %p32 = scmp.eq.s32.totalorder %s16, 1
      %p33 = por %p31, %p32
      %p34 = scmp.ne.s32.totalorder %s26, %s29
      %p35 = scmp.eq.s32.totalorder %s16, 0
      %p36 = por %p34, %p35
      %p37 = scmp.ne.s32.totalorder %s26, %s29
      %p38 = scmp.eq.s32.totalorder %s21, 1
      %p39 = por %p37, %p38
      %p40 = scmp.ne.s32.totalorder %s29, %s30
      %p41 = scmp.eq.s32.totalorder %s21, 0
      %p42 = por %p40, %p41
      %p43 = scmp.ne.s32.totalorder %s29, %s30
      %p44 = scmp.eq.s32.totalorder %s22, 1
      %p45 = por %p43, %p44
      %p47 = scmp.ne.s32.totalorder %s30, %s46
      %p48 = scmp.eq.s32.totalorder %s22, 0
      %p49 = por %p47, %p48
      %s51 = sadd.s32 %s50, 1
      %p54 = scmp.eq.s32.totalorder %s16, 1
      %p55 = scmp.ne.s32.totalorder %s50, %s52
      %p56 = scmp.eq.s32.totalorder %s16, 0
      %p57 = por %p55, %p56
      %p58 = scmp.ne.s32.totalorder %s50, %s52
      %p59 = scmp.eq.s32.totalorder %s21, 1
      %p60 = por %p58, %p59
      %p61 = scmp.ne.s32.totalorder %s52, %s53
      %p62 = scmp.eq.s32.totalorder %s21, 0
      %p63 = por %p61, %p62
      %p64 = scmp.ne.s32.totalorder %s52, %s53
      %p65 = scmp.eq.s32.totalorder %s22, 1
      %p66 = por %p64, %p65
      %p68 = scmp.ne.s32.totalorder %s53, %s67
      %p69 = scmp.eq.s32.totalorder %s22, 0
      %p70 = por %p68, %p69
      %s72 = sadd.s32 %s71, 1
      %p75 = scmp.eq.s32.totalorder %s16, 1
      %p76 = scmp.ne.s32.totalorder %s71, %s73
      %p77 = scmp.eq.s32.totalorder %s16, 0
      %p78 = por %p76, %p77
      %p79 = scmp.ne.s32.totalorder %s71, %s73
      %p80 = scmp.eq.s32.totalorder %s21, 1
      %p81 = por %p79, %p80
      %p82 = scmp.ne.s32.totalorder %s73, %s74
      %p83 = scmp.eq.s32.totalorder %s21, 0
      %p84 = por %p82, %p83
      %p85 = scmp.ne.s32.totalorder %s73, %s74
      %p86 = scmp.eq.s32.totalorder %s22, 1
      %p87 = por %p85, %p86
      %p89 = scmp.ne.s32.totalorder %s74, %s88
      %p90 = scmp.eq.s32.totalorder %s22, 0
      %p91 = por %p89, %p90
      %s92 = ssub.s32 %s16, %s23
      %p93 = scmp.eq.s32.totalorder %s92, 0
      %s95 = sadd.s32 %s94, 1
      %s96 = scalar_select %p93, %s94, %s95
      %p99 = pneg %p93
      %p100 = scmp.eq.s32.totalorder %s16, 1
      %p101 = por %p99, %p100
      %p102 = scmp.ne.s32.totalorder %s94, %s97
      %p103 = scmp.eq.s32.totalorder %s16, 0
      %p104 = por %p102, %p103
      %p105 = scmp.ne.s32.totalorder %s94, %s97
      %p106 = scmp.eq.s32.totalorder %s21, 1
      %p107 = por %p105, %p106
      %p108 = scmp.ne.s32.totalorder %s97, %s98
      %p109 = scmp.eq.s32.totalorder %s21, 0
      %p110 = por %p108, %p109
      %p111 = scmp.ne.s32.totalorder %s97, %s98
      %p112 = scmp.eq.s32.totalorder %s22, 1
      %p113 = por %p111, %p112
      %p115 = scmp.ne.s32.totalorder %s98, %s114
      %p116 = scmp.eq.s32.totalorder %s22, 0
      %p117 = por %p115, %p116
      %p118 = scmp.le.s32.totalorder 1, %s16
      %p119 = scmp.lt.s32.totalorder %s16, 3
      %p120 = pnand %p118, %p119
      %p121 = pneg %p120
      // Predicated region
      $region9: #{tpu_custom_call.1} parent=5 // pred_check
        _
      $region10: #{tpu_custom_call.1} parent=5 // pred_check_branch
        %123 = sbr.rel (%p120) target = $region12
      $region11: #{tpu_custom_call.1} parent=5 // pred_region
        %s124 = ssub.s32 %s16, 1
        // Predicated region
        $region13: #{tpu_custom_call.1} parent=11 // pred_check
          %p125 = pneg %p63
        $region14: #{tpu_custom_call.1} parent=11 // pred_check_branch
          %127 = sbr.rel (%p125) target = $region16
        $region15: #{tpu_custom_call.1} parent=11 // pred_region
          %s129 = ssub.s32 512, 512
          %130 = vsyncadd [#allocation6], %s129
          %s131 = sshll.u32 [#allocation5], 4
          %s132 = int_to_ptr.vmem [resolvable:$true] %s131
          %137 = dma.hbm_to_vmem [thread:$0]  %s1, 512, %s132, [#allocation6], 128, 128, 8
        $region16: #{tpu_custom_call.1} parent=11 // pred_fallthru
          _
        // Predicated region
        $region17: #{tpu_custom_call.1} parent=11 // pred_check
          %p138 = pneg %p84
        $region18: #{tpu_custom_call.1} parent=11 // pred_check_branch
          %140 = sbr.rel (%p138) target = $region20
        $region19: #{tpu_custom_call.1} parent=11 // pred_region
          _
        $region20: #{tpu_custom_call.1} parent=11 // pred_fallthru
          _
      $region12: #{tpu_custom_call.1} parent=5 // pred_fallthru
        _
      %p141 = scmp.lt.s32.totalorder %s16, 2
      // Predicated region
      $region21: #{tpu_custom_call.1} parent=5 // pred_check
        %p142 = pneg %p141
      $region22: #{tpu_custom_call.1} parent=5 // pred_check_branch
        %144 = sbr.rel (%p142) target = $region24
      $region23: #{tpu_custom_call.1} parent=5 // pred_region
        // Predicated region
        $region25: #{tpu_custom_call.1} parent=23 // pred_check
          %p145 = pneg %p36
        $region26: #{tpu_custom_call.1} parent=23 // pred_check_branch
          %147 = sbr.rel (%p145) target = $region28
        $region27: #{tpu_custom_call.1} parent=23 // pred_region
          %s148 = sand.u32 %s26, 1
          %s149 = scalar_lea.sflag [#allocation3], %s148
          %s150 = sand.u32 %s26, 1
          %s151 = smul.addr %s150, 8
          %s152 = scalar_lea.vmem [#allocation2], %s151
          %s154 = ssub.s32 128, 128
          %155 = vsyncadd %s149, %s154
          %s156 = smul.addr %s16, 128
          %s157 = scalar_lea.hbm %s0, %s156
          %s159 = sshll.u32 %s152, 4
          %s160 = int_to_ptr.vmem [resolvable:$true] %s159
          %162 = dma.hbm_to_vmem [thread:$0]  %s157, 128, %s160, %s149
        $region28: #{tpu_custom_call.1} parent=23 // pred_fallthru
          _
      $region24: #{tpu_custom_call.1} parent=5 // pred_fallthru
        _
      %p163 = scmp.le.s32.totalorder 1, %s16
      %p164 = scmp.lt.s32.totalorder %s16, 3
      %p165 = pnand %p163, %p164
      %p166 = pneg %p165
      // Predicated region
      $region29: #{tpu_custom_call.1} parent=5 // pred_check
        _
      $region30: #{tpu_custom_call.1} parent=5 // pred_check_branch
        %168 = sbr.rel (%p165) target = $region32
      $region31: #{tpu_custom_call.1} parent=5 // pred_region
        %s169 = ssub.s32 %s16, 1
        %s170 = sand.u32 %s29, 1
        %s171 = scalar_lea.sflag [#allocation3], %s170
        %s172 = sand.u32 %s29, 1
        %s173 = smul.addr %s172, 8
        %s174 = scalar_lea.vmem [#allocation2], %s173
        // Predicated region
        $region33: #{tpu_custom_call.1} parent=31 // pred_check
          %p175 = pneg %p42
        $region34: #{tpu_custom_call.1} parent=31 // pred_check_branch
          %177 = sbr.rel (%p175) target = $region36
        $region35: #{tpu_custom_call.1} parent=31 // pred_region
          %178 = dma.done %s171, 128
        $region36: #{tpu_custom_call.1} parent=31 // pred_fallthru
          _
        // Predicated region
        $region37: #{tpu_custom_call.1} parent=31 // pred_check
          %p179 = pneg %p63
        $region38: #{tpu_custom_call.1} parent=31 // pred_check_branch
          %181 = sbr.rel (%p179) target = $region40
        $region39: #{tpu_custom_call.1} parent=31 // pred_region
          %182 = dma.done [#allocation6], 512
        $region40: #{tpu_custom_call.1} parent=31 // pred_fallthru
          _
        %s183 = sand.u32 %s29, 1
        %s184 = scalar_lea.sflag [#allocation3], %s183
        %s185 = sand.u32 %s29, 1
        %s186 = smul.addr %s185, 8
        %s187 = scalar_lea.vmem [#allocation2], %s186
        %p188 = pneg %p42
        %p189 = pneg %p39
        %p190 = pneg %p63
        %p191 = pneg %p60
        %p192 = pneg %p84
        %p193 = pneg %p81
        %p194 = pneg %p110
        %p195 = pneg %p107
        %s196 = sand.u32 %s97, 1
        %s197 = scalar_lea.sflag [#allocation4], %s196
        %s198 = sand.u32 %s97, 1
        %s199 = smul.addr %s198, 8
        %s200 = scalar_lea.vmem [#allocation7], %s199
        %v201 = vld [vmem:[%s174] sm:$0xff]
        %v202 = vld [vmem:[#allocation5] sm:$0xff]
        %v203 = vld [vmem:[#allocation5 + $0x8] sm:$0xff]
        %v204 = vld [vmem:[#allocation5 + $0x10] sm:$0xff]
        %v205 = vld [vmem:[#allocation5 + $0x18] sm:$0xff]
        %v206 = vld [vmem:[%s2] sm:$0x1]
        %v208 = vlaneseq
        %v209 = vshrl.u32 %v208, 7
        %v210 = vsub.s32 0, %v209
        %v211 = vrot.slane %v206, %v210
        %vm213 = vcmask 261120
        %v215 = vsel %vm213, %v201, 0
        %217 = vmatprep.subr.mxu0 0.0
        %218 = vmatpush1.msra.mxu0 0.0
        %219 = vmatprep.subr.mxu0 0.0
        %220 = vmatpush1.msra.mxu0 0.0
        %221 = vmatprep.subr.mxu0 0.0
        %222 = vmatpush1.msra.mxu0 0.0
        %223 = vmatprep.subr.mxu0 0.0
        %224 = vmatpush1.msra.mxu0 0.0
        %225 = vmatprep.subr.mxu0 0.0
        %226 = vmatpush1.msra.mxu0 0.0
        %227 = vmatprep.subr.mxu0 0.0
        %228 = vmatpush1.msra.mxu0 0.0
        %229 = vmatprep.subr.mxu0 0.0
        %230 = vmatpush1.msra.mxu0 0.0
        %231 = vmatprep.subr.mxu0 0.0
        %232 = vmatpush1.msra.mxu0 0.0
        %233 = vmatprep.subr.mxu0 0.0
        %234 = vmatpush1.msra.mxu0 0.0
        %235 = vmatprep.subr.mxu0 0.0
        %236 = vmatpush1.msra.mxu0 0.0
        %237 = vmatprep.subr.mxu0 0.0
        %238 = vmatpush1.msra.mxu0 0.0
        %239 = vmatprep.subr.mxu0 0.0
        %240 = vmatpush1.msra.mxu0 0.0
        %241 = vmatprep.subr.mxu0 0.0
        %242 = vmatpush1.msra.mxu0 %v205
        %243 = vmatprep.subr.mxu0 0.0
        %244 = vmatpush1.msra.mxu0 %v204
        %245 = vmatprep.subr.mxu0 0.0
        %246 = vmatpush1.msra.mxu0 %v203
        %247 = vmatprep.subr.mxu0 0.0
        %248 = vmatpush1.msra.mxu0 %v202
        %249 = vmatprep.subr.mxu0 0.0
        %250 = vmatpush2.msra.mxu0 0.0
        %251 = vmatprep.subr.mxu0 0.0
        %252 = vmatpush2.msra.mxu0 0.0
        %253 = vmatprep.subr.mxu0 0.0
        %254 = vmatpush2.msra.mxu0 0.0
        %255 = vmatprep.subr.mxu0 0.0
        %256 = vmatpush2.msra.mxu0 0.0
        %257 = vmatprep.subr.mxu0 0.0
        %258 = vmatpush2.msra.mxu0 0.0
        %259 = vmatprep.subr.mxu0 0.0
        %260 = vmatpush2.msra.mxu0 0.0
        %261 = vmatprep.subr.mxu0 0.0
        %262 = vmatpush2.msra.mxu0 0.0
        %263 = vmatprep.subr.mxu0 0.0
        %264 = vmatpush2.msra.mxu0 0.0
        %265 = vmatprep.subr.mxu0 0.0
        %266 = vmatpush2.msra.mxu0 0.0
        %267 = vmatprep.subr.mxu0 0.0
        %268 = vmatpush2.msra.mxu0 0.0
        %269 = vmatprep.subr.mxu0 0.0
        %270 = vmatpush2.msra.mxu0 0.0
        %271 = vmatprep.subr.mxu0 0.0
        %272 = vmatpush2.msra.mxu0 0.0
        %273 = vmatprep.subr.mxu0 0.0
        %274 = vmatpush2.msra.mxu0 0.0
        %275 = vmatprep.subr.mxu0 0.0
        %276 = vmatpush2.msra.mxu0 0.0
        %277 = vmatprep.subr.mxu0 0.0
        %278 = vmatpush2.msra.mxu0 0.0
        %279 = vmatprep.subr.mxu0 0.0
        %280 = vmatpush2.msra.mxu0 0.0
        %281 = vmatprep.mubr.f32.mxu0 0.0
        %282 = vmatmul.mubr.f32.gmra.mxu0 %v215
        %v283 = vpop.f32.mrf.mxu0
        %v284 = vadd.f32 %v211, %v283
        %v285 = vpop.f32.mrf.mxu0
        %286 = vdwg.mxu0
        %288 = vrot.lane.b32.xlu0 %v284, 120
        %v289 = vpop.permute.xlu0 %288
        %290 = vrot.lane.b32.xlu0 %v284, 112
        %v291 = vpop.permute.xlu0 %290
        %292 = vrot.lane.b32.xlu0 %v284, 104
        %v293 = vpop.permute.xlu0 %292
        %294 = vrot.lane.b32.xlu0 %v284, 96
        %v295 = vpop.permute.xlu0 %294
        %vm296 = vcmask 64512
        %v297 = vsel %vm296, %v284, 0
        %v299 = vsel %vm296, %v295, 0
        %301 = vmatprep.subr.mxu0 0.0
        %302 = vmatpush1.xpose.msra.mxu0 0.0
        %303 = vmatprep.subr.mxu0 0.0
        %304 = vmatpush1.xpose.msra.mxu0 0.0
        %305 = vmatprep.subr.mxu0 0.0
        %306 = vmatpush1.xpose.msra.mxu0 0.0
        %307 = vmatprep.subr.mxu0 0.0
        %308 = vmatpush1.xpose.msra.mxu0 0.0
        %309 = vmatprep.subr.mxu0 0.0
        %310 = vmatpush1.xpose.msra.mxu0 0.0
        %311 = vmatprep.subr.mxu0 0.0
        %312 = vmatpush1.xpose.msra.mxu0 0.0
        %313 = vmatprep.subr.mxu0 0.0
        %314 = vmatpush1.xpose.msra.mxu0 0.0
        %315 = vmatprep.subr.mxu0 0.0
        %316 = vmatpush1.xpose.msra.mxu0 0.0
        %317 = vmatprep.subr.mxu0 0.0
        %318 = vmatpush1.xpose.msra.mxu0 0.0
        %319 = vmatprep.subr.mxu0 0.0
        %320 = vmatpush1.xpose.msra.mxu0 0.0
        %321 = vmatprep.subr.mxu0 0.0
        %322 = vmatpush1.xpose.msra.mxu0 0.0
        %323 = vmatprep.subr.mxu0 0.0
        %324 = vmatpush1.xpose.msra.mxu0 0.0
        %325 = vmatprep.subr.mxu0 0.0
        %326 = vmatpush1.xpose.msra.mxu0 0.0
        %327 = vmatprep.subr.mxu0 0.0
        %328 = vmatpush1.xpose.msra.mxu0 0.0
        %329 = vmatprep.subr.mxu0 0.0
        %330 = vmatpush1.xpose.msra.mxu0 0.0
        %331 = vmatprep.subr.mxu0 0.0
        %332 = vmatpush1.xpose.msra.mxu0 %v299
        %333 = vmatprep.subr.mxu0 0.0
        %334 = vmatpush2.xpose.msra.mxu0 0.0
        %335 = vmatprep.subr.mxu0 0.0
        %336 = vmatpush2.xpose.msra.mxu0 0.0
        %337 = vmatprep.subr.mxu0 0.0
        %338 = vmatpush2.xpose.msra.mxu0 0.0
        %339 = vmatprep.subr.mxu0 0.0
        %340 = vmatpush2.xpose.msra.mxu0 0.0
        %341 = vmatprep.subr.mxu0 0.0
        %342 = vmatpush2.xpose.msra.mxu0 0.0
        %343 = vmatprep.subr.mxu0 0.0
        %344 = vmatpush2.xpose.msra.mxu0 0.0
        %345 = vmatprep.subr.mxu0 0.0
        %346 = vmatpush2.xpose.msra.mxu0 0.0
        %347 = vmatprep.subr.mxu0 0.0
        %348 = vmatpush2.xpose.msra.mxu0 0.0
        %349 = vmatprep.subr.mxu0 0.0
        %350 = vmatpush2.xpose.msra.mxu0 0.0
        %351 = vmatprep.subr.mxu0 0.0
        %352 = vmatpush2.xpose.msra.mxu0 0.0
        %353 = vmatprep.subr.mxu0 0.0
        %354 = vmatpush2.xpose.msra.mxu0 0.0
        %355 = vmatprep.subr.mxu0 0.0
        %356 = vmatpush2.xpose.msra.mxu0 0.0
        %357 = vmatprep.subr.mxu0 0.0
        %358 = vmatpush2.xpose.msra.mxu0 0.0
        %359 = vmatprep.subr.mxu0 0.0
        %360 = vmatpush2.xpose.msra.mxu0 0.0
        %361 = vmatprep.subr.mxu0 0.0
        %362 = vmatpush2.xpose.msra.mxu0 0.0
        %363 = vmatprep.subr.mxu0 0.0
        %364 = vmatpush2.xpose.msra.mxu0 0.0
        %365 = vmatprep.mubr.f32.mxu0 0.0
        %366 = vmatmul.mubr.f32.gmra.mxu0 %v297
        %v367 = vpop.f32.mrf.mxu0
        %v368 = vadd.f32 0.0, %v367
        %v369 = vpop.f32.mrf.mxu0
        %370 = vdwg.mxu0
        %371 = vrot.lane.b32.xlu0 %v289, 96
        %v372 = vpop.permute.xlu0 %371
        %v373 = vsel %vm296, %v289, 0
        %v375 = vsel %vm296, %v372, 0
        %377 = vmatprep.subr.mxu0 0.0
        %378 = vmatpush1.xpose.msra.mxu0 0.0
        %379 = vmatprep.subr.mxu0 0.0
        %380 = vmatpush1.xpose.msra.mxu0 0.0
        %381 = vmatprep.subr.mxu0 0.0
        %382 = vmatpush1.xpose.msra.mxu0 0.0
        %383 = vmatprep.subr.mxu0 0.0
        %384 = vmatpush1.xpose.msra.mxu0 0.0
        %385 = vmatprep.subr.mxu0 0.0
        %386 = vmatpush1.xpose.msra.mxu0 0.0
        %387 = vmatprep.subr.mxu0 0.0
        %388 = vmatpush1.xpose.msra.mxu0 0.0
        %389 = vmatprep.subr.mxu0 0.0
        %390 = vmatpush1.xpose.msra.mxu0 0.0
        %391 = vmatprep.subr.mxu0 0.0
        %392 = vmatpush1.xpose.msra.mxu0 0.0
        %393 = vmatprep.subr.mxu0 0.0
        %394 = vmatpush1.xpose.msra.mxu0 0.0
        %395 = vmatprep.subr.mxu0 0.0
        %396 = vmatpush1.xpose.msra.mxu0 0.0
        %397 = vmatprep.subr.mxu0 0.0
        %398 = vmatpush1.xpose.msra.mxu0 0.0
        %399 = vmatprep.subr.mxu0 0.0
        %400 = vmatpush1.xpose.msra.mxu0 0.0
        %401 = vmatprep.subr.mxu0 0.0
        %402 = vmatpush1.xpose.msra.mxu0 0.0
        %403 = vmatprep.subr.mxu0 0.0
        %404 = vmatpush1.xpose.msra.mxu0 0.0
        %405 = vmatprep.subr.mxu0 0.0
        %406 = vmatpush1.xpose.msra.mxu0 0.0
        %407 = vmatprep.subr.mxu0 0.0
        %408 = vmatpush1.xpose.msra.mxu0 %v375
        %409 = vmatprep.subr.mxu0 0.0
        %410 = vmatpush2.xpose.msra.mxu0 0.0
        %411 = vmatprep.subr.mxu0 0.0
        %412 = vmatpush2.xpose.msra.mxu0 0.0
        %413 = vmatprep.subr.mxu0 0.0
        %414 = vmatpush2.xpose.msra.mxu0 0.0
        %415 = vmatprep.subr.mxu0 0.0
        %416 = vmatpush2.xpose.msra.mxu0 0.0
        %417 = vmatprep.subr.mxu0 0.0
        %418 = vmatpush2.xpose.msra.mxu0 0.0
        %419 = vmatprep.subr.mxu0 0.0
        %420 = vmatpush2.xpose.msra.mxu0 0.0
        %421 = vmatprep.subr.mxu0 0.0
        %422 = vmatpush2.xpose.msra.mxu0 0.0
        %423 = vmatprep.subr.mxu0 0.0
        %424 = vmatpush2.xpose.msra.mxu0 0.0
        %425 = vmatprep.subr.mxu0 0.0
        %426 = vmatpush2.xpose.msra.mxu0 0.0
        %427 = vmatprep.subr.mxu0 0.0
        %428 = vmatpush2.xpose.msra.mxu0 0.0
        %429 = vmatprep.subr.mxu0 0.0
        %430 = vmatpush2.xpose.msra.mxu0 0.0
        %431 = vmatprep.subr.mxu0 0.0
        %432 = vmatpush2.xpose.msra.mxu0 0.0
        %433 = vmatprep.subr.mxu0 0.0
        %434 = vmatpush2.xpose.msra.mxu0 0.0
        %435 = vmatprep.subr.mxu0 0.0
        %436 = vmatpush2.xpose.msra.mxu0 0.0
        %437 = vmatprep.subr.mxu0 0.0
        %438 = vmatpush2.xpose.msra.mxu0 0.0
        %439 = vmatprep.subr.mxu0 0.0
        %440 = vmatpush2.xpose.msra.mxu0 0.0
        %441 = vmatprep.mubr.f32.mxu0 0.0
        %442 = vmatmul.mubr.f32.gmra.mxu0 %v373
        %v443 = vpop.f32.mrf.mxu0
        %v444 = vadd.f32 0.0, %v443
        %v445 = vpop.f32.mrf.mxu0
        %446 = vdwg.mxu0
        %447 = vrot.lane.b32.xlu0 %v291, 96
        %v448 = vpop.permute.xlu0 %447
        %v449 = vsel %vm296, %v291, 0
        %v451 = vsel %vm296, %v448, 0
        %453 = vmatprep.subr.mxu0 0.0
        %454 = vmatpush1.xpose.msra.mxu0 0.0
        %455 = vmatprep.subr.mxu0 0.0
        %456 = vmatpush1.xpose.msra.mxu0 0.0
        %457 = vmatprep.subr.mxu0 0.0
        %458 = vmatpush1.xpose.msra.mxu0 0.0
        %459 = vmatprep.subr.mxu0 0.0
        %460 = vmatpush1.xpose.msra.mxu0 0.0
        %461 = vmatprep.subr.mxu0 0.0
        %462 = vmatpush1.xpose.msra.mxu0 0.0
        %463 = vmatprep.subr.mxu0 0.0
        %464 = vmatpush1.xpose.msra.mxu0 0.0
        %465 = vmatprep.subr.mxu0 0.0
        %466 = vmatpush1.xpose.msra.mxu0 0.0
        %467 = vmatprep.subr.mxu0 0.0
        %468 = vmatpush1.xpose.msra.mxu0 0.0
        %469 = vmatprep.subr.mxu0 0.0
        %470 = vmatpush1.xpose.msra.mxu0 0.0
        %471 = vmatprep.subr.mxu0 0.0
        %472 = vmatpush1.xpose.msra.mxu0 0.0
        %473 = vmatprep.subr.mxu0 0.0
        %474 = vmatpush1.xpose.msra.mxu0 0.0
        %475 = vmatprep.subr.mxu0 0.0
        %476 = vmatpush1.xpose.msra.mxu0 0.0
        %477 = vmatprep.subr.mxu0 0.0
        %478 = vmatpush1.xpose.msra.mxu0 0.0
        %479 = vmatprep.subr.mxu0 0.0
        %480 = vmatpush1.xpose.msra.mxu0 0.0
        %481 = vmatprep.subr.mxu0 0.0
        %482 = vmatpush1.xpose.msra.mxu0 0.0
        %483 = vmatprep.subr.mxu0 0.0
        %484 = vmatpush1.xpose.msra.mxu0 %v451
        %485 = vmatprep.subr.mxu0 0.0
        %486 = vmatpush2.xpose.msra.mxu0 0.0
        %487 = vmatprep.subr.mxu0 0.0
        %488 = vmatpush2.xpose.msra.mxu0 0.0
        %489 = vmatprep.subr.mxu0 0.0
        %490 = vmatpush2.xpose.msra.mxu0 0.0
        %491 = vmatprep.subr.mxu0 0.0
        %492 = vmatpush2.xpose.msra.mxu0 0.0
        %493 = vmatprep.subr.mxu0 0.0
        %494 = vmatpush2.xpose.msra.mxu0 0.0
        %495 = vmatprep.subr.mxu0 0.0
        %496 = vmatpush2.xpose.msra.mxu0 0.0
        %497 = vmatprep.subr.mxu0 0.0
        %498 = vmatpush2.xpose.msra.mxu0 0.0
        %499 = vmatprep.subr.mxu0 0.0
        %500 = vmatpush2.xpose.msra.mxu0 0.0
        %501 = vmatprep.subr.mxu0 0.0
        %502 = vmatpush2.xpose.msra.mxu0 0.0
        %503 = vmatprep.subr.mxu0 0.0
        %504 = vmatpush2.xpose.msra.mxu0 0.0
        %505 = vmatprep.subr.mxu0 0.0
        %506 = vmatpush2.xpose.msra.mxu0 0.0
        %507 = vmatprep.subr.mxu0 0.0
        %508 = vmatpush2.xpose.msra.mxu0 0.0
        %509 = vmatprep.subr.mxu0 0.0
        %510 = vmatpush2.xpose.msra.mxu0 0.0
        %511 = vmatprep.subr.mxu0 0.0
        %512 = vmatpush2.xpose.msra.mxu0 0.0
        %513 = vmatprep.subr.mxu0 0.0
        %514 = vmatpush2.xpose.msra.mxu0 0.0
        %515 = vmatprep.subr.mxu0 0.0
        %516 = vmatpush2.xpose.msra.mxu0 0.0
        %517 = vmatprep.mubr.f32.mxu0 0.0
        %518 = vmatmul.mubr.f32.gmra.mxu0 %v449
        %v519 = vpop.f32.mrf.mxu0
        %v520 = vadd.f32 0.0, %v519
        %v521 = vpop.f32.mrf.mxu0
        %522 = vdwg.mxu0
        %523 = vrot.lane.b32.xlu0 %v293, 96
        %v524 = vpop.permute.xlu0 %523
        %v525 = vsel %vm296, %v293, 0
        %v527 = vsel %vm296, %v524, 0
        %529 = vmatprep.subr.mxu0 0.0
        %530 = vmatpush1.xpose.msra.mxu0 0.0
        %531 = vmatprep.subr.mxu0 0.0
        %532 = vmatpush1.xpose.msra.mxu0 0.0
        %533 = vmatprep.subr.mxu0 0.0
        %534 = vmatpush1.xpose.msra.mxu0 0.0
        %535 = vmatprep.subr.mxu0 0.0
        %536 = vmatpush1.xpose.msra.mxu0 0.0
        %537 = vmatprep.subr.mxu0 0.0
        %538 = vmatpush1.xpose.msra.mxu0 0.0
        %539 = vmatprep.subr.mxu0 0.0
        %540 = vmatpush1.xpose.msra.mxu0 0.0
        %541 = vmatprep.subr.mxu0 0.0
        %542 = vmatpush1.xpose.msra.mxu0 0.0
        %543 = vmatprep.subr.mxu0 0.0
        %544 = vmatpush1.xpose.msra.mxu0 0.0
        %545 = vmatprep.subr.mxu0 0.0
        %546 = vmatpush1.xpose.msra.mxu0 0.0
        %547 = vmatprep.subr.mxu0 0.0
        %548 = vmatpush1.xpose.msra.mxu0 0.0
        %549 = vmatprep.subr.mxu0 0.0
        %550 = vmatpush1.xpose.msra.mxu0 0.0
        %551 = vmatprep.subr.mxu0 0.0
        %552 = vmatpush1.xpose.msra.mxu0 0.0
        %553 = vmatprep.subr.mxu0 0.0
        %554 = vmatpush1.xpose.msra.mxu0 0.0
        %555 = vmatprep.subr.mxu0 0.0
        %556 = vmatpush1.xpose.msra.mxu0 0.0
        %557 = vmatprep.subr.mxu0 0.0
        %558 = vmatpush1.xpose.msra.mxu0 0.0
        %559 = vmatprep.subr.mxu0 0.0
        %560 = vmatpush1.xpose.msra.mxu0 %v527
        %561 = vmatprep.subr.mxu0 0.0
        %562 = vmatpush2.xpose.msra.mxu0 0.0
        %563 = vmatprep.subr.mxu0 0.0
        %564 = vmatpush2.xpose.msra.mxu0 0.0
        %565 = vmatprep.subr.mxu0 0.0
        %566 = vmatpush2.xpose.msra.mxu0 0.0
        %567 = vmatprep.subr.mxu0 0.0
        %568 = vmatpush2.xpose.msra.mxu0 0.0
        %569 = vmatprep.subr.mxu0 0.0
        %570 = vmatpush2.xpose.msra.mxu0 0.0
        %571 = vmatprep.subr.mxu0 0.0
        %572 = vmatpush2.xpose.msra.mxu0 0.0
        %573 = vmatprep.subr.mxu0 0.0
        %574 = vmatpush2.xpose.msra.mxu0 0.0
        %575 = vmatprep.subr.mxu0 0.0
        %576 = vmatpush2.xpose.msra.mxu0 0.0
        %577 = vmatprep.subr.mxu0 0.0
        %578 = vmatpush2.xpose.msra.mxu0 0.0
        %579 = vmatprep.subr.mxu0 0.0
        %580 = vmatpush2.xpose.msra.mxu0 0.0
        %581 = vmatprep.subr.mxu0 0.0
        %582 = vmatpush2.xpose.msra.mxu0 0.0
        %583 = vmatprep.subr.mxu0 0.0
        %584 = vmatpush2.xpose.msra.mxu0 0.0
        %585 = vmatprep.subr.mxu0 0.0
        %586 = vmatpush2.xpose.msra.mxu0 0.0
        %587 = vmatprep.subr.mxu0 0.0
        %588 = vmatpush2.xpose.msra.mxu0 0.0
        %589 = vmatprep.subr.mxu0 0.0
        %590 = vmatpush2.xpose.msra.mxu0 0.0
        %591 = vmatprep.subr.mxu0 0.0
        %592 = vmatpush2.xpose.msra.mxu0 0.0
        %593 = vmatprep.mubr.f32.mxu0 0.0
        %594 = vmatmul.mubr.f32.gmra.mxu0 %v525
        %v595 = vpop.f32.mrf.mxu0
        %v596 = vadd.f32 0.0, %v595
        %v597 = vpop.f32.mrf.mxu0
        %598 = vdwg.mxu0
        %v599 = vmul.f32 %v368, 0.35355338
        %v600 = vmul.f32 %v444, 0.35355338
        %v601 = vmul.f32 %v520, 0.35355338
        %v602 = vmul.f32 %v596, 0.35355338
        %v603 = vsel %vm296, %v599, -inf
        %604 = vmax.xlane.f32.xlu0 %v603
        %v605 = vpop.xlane.xlu0 %604
        %v606 = vsel %vm296, %v600, -inf
        %607 = vmax.xlane.f32.xlu0 %v606
        %v608 = vpop.xlane.xlu0 %607
        %v609 = vsel %vm296, %v601, -inf
        %610 = vmax.xlane.f32.xlu0 %v609
        %v611 = vpop.xlane.xlu0 %610
        %v612 = vsel %vm296, %v602, -inf
        %613 = vmax.xlane.f32.xlu0 %v612
        %v614 = vpop.xlane.xlu0 %613
        %v615 = vsub.f32 %v599, %v605
        %v616 = vsub.f32 %v600, %v608
        %v617 = vsub.f32 %v601, %v611
        %v618 = vsub.f32 %v602, %v614
        %v619 = vmul.f32 %v615, 1.442695
        %v620 = vpow.pop %v619
        %v621 = vmul.f32 %v616, 1.442695
        %v622 = vpow.pop %v621
        %v623 = vmul.f32 %v617, 1.442695
        %v624 = vpow.pop %v623
        %v625 = vmul.f32 %v618, 1.442695
        %v626 = vpow.pop %v625
        %v627 = vsel %vm296, %v620, 0.0
        %628 = vadd.xlane.f32.xlu0 %v627
        %v629 = vpop.xlane.xlu0 %628
        %v630 = vsel %vm296, %v622, 0.0
        %631 = vadd.xlane.f32.xlu0 %v630
        %v632 = vpop.xlane.xlu0 %631
        %v633 = vsel %vm296, %v624, 0.0
        %634 = vadd.xlane.f32.xlu0 %v633
        %v635 = vpop.xlane.xlu0 %634
        %v636 = vsel %vm296, %v626, 0.0
        %637 = vadd.xlane.f32.xlu0 %v636
        %v638 = vpop.xlane.xlu0 %637
        %v639 = vrcp.pop %v629
        %v640 = vrcp.pop %v632
        %v641 = vrcp.pop %v635
        %v642 = vrcp.pop %v638
        %v643 = vmul.f32 %v620, %v639
        %v644 = vmul.f32 %v622, %v640
        %v645 = vmul.f32 %v624, %v641
        %v646 = vmul.f32 %v626, %v642
        %647 = vrot.lane.b32.xlu0 %v284, 64
        %v648 = vpop.permute.xlu0 %647
        %v651 = vsel %vm296, %v643, 0
        %653 = vmatprep.subr.mxu0 0.0
        %654 = vmatpush1.msra.mxu0 0.0
        %655 = vmatprep.subr.mxu0 0.0
        %656 = vmatpush1.msra.mxu0 0.0
        %657 = vmatprep.subr.mxu0 0.0
        %658 = vmatpush1.msra.mxu0 0.0
        %659 = vmatprep.subr.mxu0 0.0
        %660 = vmatpush1.msra.mxu0 0.0
        %661 = vmatprep.subr.mxu0 0.0
        %662 = vmatpush1.msra.mxu0 0.0
        %663 = vmatprep.subr.mxu0 0.0
        %664 = vmatpush1.msra.mxu0 0.0
        %665 = vmatprep.subr.mxu0 0.0
        %666 = vmatpush1.msra.mxu0 0.0
        %667 = vmatprep.subr.mxu0 0.0
        %668 = vmatpush1.msra.mxu0 0.0
        %669 = vmatprep.subr.mxu0 0.0
        %670 = vmatpush1.msra.mxu0 0.0
        %671 = vmatprep.subr.mxu0 0.0
        %672 = vmatpush1.msra.mxu0 0.0
        %673 = vmatprep.subr.mxu0 0.0
        %674 = vmatpush1.msra.mxu0 0.0
        %675 = vmatprep.subr.mxu0 0.0
        %676 = vmatpush1.msra.mxu0 0.0
        %677 = vmatprep.subr.mxu0 0.0
        %678 = vmatpush1.msra.mxu0 0.0
        %679 = vmatprep.subr.mxu0 0.0
        %680 = vmatpush1.msra.mxu0 0.0
        %681 = vmatprep.subr.mxu0 0.0
        %682 = vmatpush1.msra.mxu0 0.0
        %683 = vmatprep.subr.mxu0 0.0
        %684 = vmatpush1.msra.mxu0 %v648
        %685 = vmatprep.subr.mxu0 0.0
        %686 = vmatpush2.msra.mxu0 0.0
        %687 = vmatprep.subr.mxu0 0.0
        %688 = vmatpush2.msra.mxu0 0.0
        %689 = vmatprep.subr.mxu0 0.0
        %690 = vmatpush2.msra.mxu0 0.0
        %691 = vmatprep.subr.mxu0 0.0
        %692 = vmatpush2.msra.mxu0 0.0
        %693 = vmatprep.subr.mxu0 0.0
        %694 = vmatpush2.msra.mxu0 0.0
        %695 = vmatprep.subr.mxu0 0.0
        %696 = vmatpush2.msra.mxu0 0.0
        %697 = vmatprep.subr.mxu0 0.0
        %698 = vmatpush2.msra.mxu0 0.0
        %699 = vmatprep.subr.mxu0 0.0
        %700 = vmatpush2.msra.mxu0 0.0
        %701 = vmatprep.subr.mxu0 0.0
        %702 = vmatpush2.msra.mxu0 0.0
        %703 = vmatprep.subr.mxu0 0.0
        %704 = vmatpush2.msra.mxu0 0.0
        %705 = vmatprep.subr.mxu0 0.0
        %706 = vmatpush2.msra.mxu0 0.0
        %707 = vmatprep.subr.mxu0 0.0
        %708 = vmatpush2.msra.mxu0 0.0
        %709 = vmatprep.subr.mxu0 0.0
        %710 = vmatpush2.msra.mxu0 0.0
        %711 = vmatprep.subr.mxu0 0.0
        %712 = vmatpush2.msra.mxu0 0.0
        %713 = vmatprep.subr.mxu0 0.0
        %714 = vmatpush2.msra.mxu0 0.0
        %715 = vmatprep.subr.mxu0 0.0
        %716 = vmatpush2.msra.mxu0 0.0
        %717 = vmatprep.mubr.f32.mxu0 0.0
        %718 = vmatmul.mubr.f32.gmra.mxu0 %v651
        %v719 = vpop.f32.mrf.mxu0
        %v720 = vadd.f32 0.0, %v719
        %v721 = vpop.f32.mrf.mxu0
        %722 = vdwg.mxu0
        %723 = vrot.lane.b32.xlu0 %v289, 64
        %v724 = vpop.permute.xlu0 %723
        %v727 = vsel %vm296, %v644, 0
        %729 = vmatprep.subr.mxu0 0.0
        %730 = vmatpush1.msra.mxu0 0.0
        %731 = vmatprep.subr.mxu0 0.0
        %732 = vmatpush1.msra.mxu0 0.0
        %733 = vmatprep.subr.mxu0 0.0
        %734 = vmatpush1.msra.mxu0 0.0
        %735 = vmatprep.subr.mxu0 0.0
        %736 = vmatpush1.msra.mxu0 0.0
        %737 = vmatprep.subr.mxu0 0.0
        %738 = vmatpush1.msra.mxu0 0.0
        %739 = vmatprep.subr.mxu0 0.0
        %740 = vmatpush1.msra.mxu0 0.0
        %741 = vmatprep.subr.mxu0 0.0
        %742 = vmatpush1.msra.mxu0 0.0
        %743 = vmatprep.subr.mxu0 0.0
        %744 = vmatpush1.msra.mxu0 0.0
        %745 = vmatprep.subr.mxu0 0.0
        %746 = vmatpush1.msra.mxu0 0.0
        %747 = vmatprep.subr.mxu0 0.0
        %748 = vmatpush1.msra.mxu0 0.0
        %749 = vmatprep.subr.mxu0 0.0
        %750 = vmatpush1.msra.mxu0 0.0
        %751 = vmatprep.subr.mxu0 0.0
        %752 = vmatpush1.msra.mxu0 0.0
        %753 = vmatprep.subr.mxu0 0.0
        %754 = vmatpush1.msra.mxu0 0.0
        %755 = vmatprep.subr.mxu0 0.0
        %756 = vmatpush1.msra.mxu0 0.0
        %757 = vmatprep.subr.mxu0 0.0
        %758 = vmatpush1.msra.mxu0 0.0
        %759 = vmatprep.subr.mxu0 0.0
        %760 = vmatpush1.msra.mxu0 %v724
        %761 = vmatprep.subr.mxu0 0.0
        %762 = vmatpush2.msra.mxu0 0.0
        %763 = vmatprep.subr.mxu0 0.0
        %764 = vmatpush2.msra.mxu0 0.0
        %765 = vmatprep.subr.mxu0 0.0
        %766 = vmatpush2.msra.mxu0 0.0
        %767 = vmatprep.subr.mxu0 0.0
        %768 = vmatpush2.msra.mxu0 0.0
        %769 = vmatprep.subr.mxu0 0.0
        %770 = vmatpush2.msra.mxu0 0.0
        %771 = vmatprep.subr.mxu0 0.0
        %772 = vmatpush2.msra.mxu0 0.0
        %773 = vmatprep.subr.mxu0 0.0
        %774 = vmatpush2.msra.mxu0 0.0
        %775 = vmatprep.subr.mxu0 0.0
        %776 = vmatpush2.msra.mxu0 0.0
        %777 = vmatprep.subr.mxu0 0.0
        %778 = vmatpush2.msra.mxu0 0.0
        %779 = vmatprep.subr.mxu0 0.0
        %780 = vmatpush2.msra.mxu0 0.0
        %781 = vmatprep.subr.mxu0 0.0
        %782 = vmatpush2.msra.mxu0 0.0
        %783 = vmatprep.subr.mxu0 0.0
        %784 = vmatpush2.msra.mxu0 0.0
        %785 = vmatprep.subr.mxu0 0.0
        %786 = vmatpush2.msra.mxu0 0.0
        %787 = vmatprep.subr.mxu0 0.0
        %788 = vmatpush2.msra.mxu0 0.0
        %789 = vmatprep.subr.mxu0 0.0
        %790 = vmatpush2.msra.mxu0 0.0
        %791 = vmatprep.subr.mxu0 0.0
        %792 = vmatpush2.msra.mxu0 0.0
        %793 = vmatprep.mubr.f32.mxu0 0.0
        %794 = vmatmul.mubr.f32.gmra.mxu0 %v727
        %v795 = vpop.f32.mrf.mxu0
        %v796 = vadd.f32 0.0, %v795
        %v797 = vpop.f32.mrf.mxu0
        %798 = vdwg.mxu0
        %799 = vrot.lane.b32.xlu0 %v291, 64
        %v800 = vpop.permute.xlu0 %799
        %v803 = vsel %vm296, %v645, 0
        %805 = vmatprep.subr.mxu0 0.0
        %806 = vmatpush1.msra.mxu0 0.0
        %807 = vmatprep.subr.mxu0 0.0
        %808 = vmatpush1.msra.mxu0 0.0
        %809 = vmatprep.subr.mxu0 0.0
        %810 = vmatpush1.msra.mxu0 0.0
        %811 = vmatprep.subr.mxu0 0.0
        %812 = vmatpush1.msra.mxu0 0.0
        %813 = vmatprep.subr.mxu0 0.0
        %814 = vmatpush1.msra.mxu0 0.0
        %815 = vmatprep.subr.mxu0 0.0
        %816 = vmatpush1.msra.mxu0 0.0
        %817 = vmatprep.subr.mxu0 0.0
        %818 = vmatpush1.msra.mxu0 0.0
        %819 = vmatprep.subr.mxu0 0.0
        %820 = vmatpush1.msra.mxu0 0.0
        %821 = vmatprep.subr.mxu0 0.0
        %822 = vmatpush1.msra.mxu0 0.0
        %823 = vmatprep.subr.mxu0 0.0
        %824 = vmatpush1.msra.mxu0 0.0
        %825 = vmatprep.subr.mxu0 0.0
        %826 = vmatpush1.msra.mxu0 0.0
        %827 = vmatprep.subr.mxu0 0.0
        %828 = vmatpush1.msra.mxu0 0.0
        %829 = vmatprep.subr.mxu0 0.0
        %830 = vmatpush1.msra.mxu0 0.0
        %831 = vmatprep.subr.mxu0 0.0
        %832 = vmatpush1.msra.mxu0 0.0
        %833 = vmatprep.subr.mxu0 0.0
        %834 = vmatpush1.msra.mxu0 0.0
        %835 = vmatprep.subr.mxu0 0.0
        %836 = vmatpush1.msra.mxu0 %v800
        %837 = vmatprep.subr.mxu0 0.0
        %838 = vmatpush2.msra.mxu0 0.0
        %839 = vmatprep.subr.mxu0 0.0
        %840 = vmatpush2.msra.mxu0 0.0
        %841 = vmatprep.subr.mxu0 0.0
        %842 = vmatpush2.msra.mxu0 0.0
        %843 = vmatprep.subr.mxu0 0.0
        %844 = vmatpush2.msra.mxu0 0.0
        %845 = vmatprep.subr.mxu0 0.0
        %846 = vmatpush2.msra.mxu0 0.0
        %847 = vmatprep.subr.mxu0 0.0
        %848 = vmatpush2.msra.mxu0 0.0
        %849 = vmatprep.subr.mxu0 0.0
        %850 = vmatpush2.msra.mxu0 0.0
        %851 = vmatprep.subr.mxu0 0.0
        %852 = vmatpush2.msra.mxu0 0.0
        %853 = vmatprep.subr.mxu0 0.0
        %854 = vmatpush2.msra.mxu0 0.0
        %855 = vmatprep.subr.mxu0 0.0
        %856 = vmatpush2.msra.mxu0 0.0
        %857 = vmatprep.subr.mxu0 0.0
        %858 = vmatpush2.msra.mxu0 0.0
        %859 = vmatprep.subr.mxu0 0.0
        %860 = vmatpush2.msra.mxu0 0.0
        %861 = vmatprep.subr.mxu0 0.0
        %862 = vmatpush2.msra.mxu0 0.0
        %863 = vmatprep.subr.mxu0 0.0
        %864 = vmatpush2.msra.mxu0 0.0
        %865 = vmatprep.subr.mxu0 0.0
        %866 = vmatpush2.msra.mxu0 0.0
        %867 = vmatprep.subr.mxu0 0.0
        %868 = vmatpush2.msra.mxu0 0.0
        %869 = vmatprep.mubr.f32.mxu0 0.0
        %870 = vmatmul.mubr.f32.gmra.mxu0 %v803
        %v871 = vpop.f32.mrf.mxu0
        %v872 = vadd.f32 0.0, %v871
        %v873 = vpop.f32.mrf.mxu0
        %874 = vdwg.mxu0
        %875 = vrot.lane.b32.xlu0 %v293, 64
        %v876 = vpop.permute.xlu0 %875
        %v879 = vsel %vm296, %v646, 0
        %881 = vmatprep.subr.mxu0 0.0
        %882 = vmatpush1.msra.mxu0 0.0
        %883 = vmatprep.subr.mxu0 0.0
        %884 = vmatpush1.msra.mxu0 0.0
        %885 = vmatprep.subr.mxu0 0.0
        %886 = vmatpush1.msra.mxu0 0.0
        %887 = vmatprep.subr.mxu0 0.0
        %888 = vmatpush1.msra.mxu0 0.0
        %889 = vmatprep.subr.mxu0 0.0
        %890 = vmatpush1.msra.mxu0 0.0
        %891 = vmatprep.subr.mxu0 0.0
        %892 = vmatpush1.msra.mxu0 0.0
        %893 = vmatprep.subr.mxu0 0.0
        %894 = vmatpush1.msra.mxu0 0.0
        %895 = vmatprep.subr.mxu0 0.0
        %896 = vmatpush1.msra.mxu0 0.0
        %897 = vmatprep.subr.mxu0 0.0
        %898 = vmatpush1.msra.mxu0 0.0
        %899 = vmatprep.subr.mxu0 0.0
        %900 = vmatpush1.msra.mxu0 0.0
        %901 = vmatprep.subr.mxu0 0.0
        %902 = vmatpush1.msra.mxu0 0.0
        %903 = vmatprep.subr.mxu0 0.0
        %904 = vmatpush1.msra.mxu0 0.0
        %905 = vmatprep.subr.mxu0 0.0
        %906 = vmatpush1.msra.mxu0 0.0
        %907 = vmatprep.subr.mxu0 0.0
        %908 = vmatpush1.msra.mxu0 0.0
        %909 = vmatprep.subr.mxu0 0.0
        %910 = vmatpush1.msra.mxu0 0.0
        %911 = vmatprep.subr.mxu0 0.0
        %912 = vmatpush1.msra.mxu0 %v876
        %913 = vmatprep.subr.mxu0 0.0
        %914 = vmatpush2.msra.mxu0 0.0
        %915 = vmatprep.subr.mxu0 0.0
        %916 = vmatpush2.msra.mxu0 0.0
        %917 = vmatprep.subr.mxu0 0.0
        %918 = vmatpush2.msra.mxu0 0.0
        %919 = vmatprep.subr.mxu0 0.0
        %920 = vmatpush2.msra.mxu0 0.0
        %921 = vmatprep.subr.mxu0 0.0
        %922 = vmatpush2.msra.mxu0 0.0
        %923 = vmatprep.subr.mxu0 0.0
        %924 = vmatpush2.msra.mxu0 0.0
        %925 = vmatprep.subr.mxu0 0.0
        %926 = vmatpush2.msra.mxu0 0.0
        %927 = vmatprep.subr.mxu0 0.0
        %928 = vmatpush2.msra.mxu0 0.0
        %929 = vmatprep.subr.mxu0 0.0
        %930 = vmatpush2.msra.mxu0 0.0
        %931 = vmatprep.subr.mxu0 0.0
        %932 = vmatpush2.msra.mxu0 0.0
        %933 = vmatprep.subr.mxu0 0.0
        %934 = vmatpush2.msra.mxu0 0.0
        %935 = vmatprep.subr.mxu0 0.0
        %936 = vmatpush2.msra.mxu0 0.0
        %937 = vmatprep.subr.mxu0 0.0
        %938 = vmatpush2.msra.mxu0 0.0
        %939 = vmatprep.subr.mxu0 0.0
        %940 = vmatpush2.msra.mxu0 0.0
        %941 = vmatprep.subr.mxu0 0.0
        %942 = vmatpush2.msra.mxu0 0.0
        %943 = vmatprep.subr.mxu0 0.0
        %944 = vmatpush2.msra.mxu0 0.0
        %945 = vmatprep.mubr.f32.mxu0 0.0
        %946 = vmatmul.mubr.f32.gmra.mxu0 %v879
        %v947 = vpop.f32.mrf.mxu0
        %v948 = vadd.f32 0.0, %v947
        %v949 = vpop.f32.mrf.mxu0
        %950 = vdwg.mxu0
        %952 = vrot.lane.b32.xlu0 %v796, 8
        %v953 = vpop.permute.xlu0 %952
        %956 = vrot.lane.b32.xlu0 %v872, 16
        %v957 = vpop.permute.xlu0 %956
        %960 = vrot.lane.b32.xlu0 %v948, 24
        %v961 = vpop.permute.xlu0 %960
        %v963 = vsel %vm296, %v720, %v953
        %vm964 = vcmask 130048
        %v965 = vsel %vm964, %v963, %v957
        %vm966 = vcmask 195584
        %v967 = vsel %vm966, %v965, %v961
        %v968 = vtanh.pop %v967
        %969 = vst.msk [vmem:[%s200] sm:$0xff] %vm213, %v968
        %s970 = sand.u32 %s97, 1
        %s971 = scalar_lea.sflag [#allocation4], %s970
        %s972 = sand.u32 %s97, 1
        %s973 = smul.addr %s972, 8
        %s974 = scalar_lea.vmem [#allocation7], %s973
        // Predicated region
        $region41: #{tpu_custom_call.1} parent=31 // pred_check
          %p975 = pneg %p107
        $region42: #{tpu_custom_call.1} parent=31 // pred_check_branch
          %977 = sbr.rel (%p975) target = $region44
        $region43: #{tpu_custom_call.1} parent=31 // pred_region
          %s979 = ssub.s32 128, 128
          %980 = vsyncadd %s971, %s979
          %s981 = smul.addr %s21, 128
          %s982 = scalar_lea.hbm %s3, %s981
          %s984 = sshll.u32 %s974, 4
          %s985 = int_to_ptr.vmem [resolvable:$true] %s984
          %987 = dma.vmem_to_hbm [thread:$0]  %s985, 128, %s982, %s971
        $region44: #{tpu_custom_call.1} parent=31 // pred_fallthru
          _
      $region32: #{tpu_custom_call.1} parent=5 // pred_fallthru
        _
      %p988 = scmp.le.s32.totalorder 2, %s16
      // Predicated region
      $region45: #{tpu_custom_call.1} parent=5 // pred_check
        %p989 = pneg %p988
      $region46: #{tpu_custom_call.1} parent=5 // pred_check_branch
        %991 = sbr.rel (%p989) target = $region48
      $region47: #{tpu_custom_call.1} parent=5 // pred_region
        %s992 = ssub.s32 %s16, 2
        // Predicated region
        $region49: #{tpu_custom_call.1} parent=47 // pred_check
          %p993 = pneg %p113
        $region50: #{tpu_custom_call.1} parent=47 // pred_check_branch
          %995 = sbr.rel (%p993) target = $region52
        $region51: #{tpu_custom_call.1} parent=47 // pred_region
          %s996 = sand.u32 %s98, 1
          %s997 = scalar_lea.sflag [#allocation4], %s996
          %s998 = sand.u32 %s98, 1
          %s999 = smul.addr %s998, 8
          %s1000 = scalar_lea.vmem [#allocation7], %s999
          %1001 = dma.done %s997, 128
        $region52: #{tpu_custom_call.1} parent=47 // pred_fallthru
          _
      $region48: #{tpu_custom_call.1} parent=5 // pred_fallthru
        _
    $region6: #{tpu_custom_call.1} parent=1 // loop_footer
      %s20 = sadd.s32 1, %s16
    $region7: #{tpu_custom_call.1} parent=1 // loop_footer_branch
      %15 = sbr.rel target = $region3
    $region8: #{tpu_custom_call.1} parent=1 // loop_exit
      _
    %1002 = vsyncpa [#allocation3], 1
    %s1003 = scalar_lea.sflag [#allocation3], 1
    %1004 = vsyncpa %s1003, 1
    %1005 = vsyncpa [#allocation6], 1
    %1006 = vsyncpa [#allocation4], 1
    %s1007 = scalar_lea.sflag [#allocation4], 1
    %1008 = vsyncpa %s1007, 1

</llo_original>
